<compile_context>
chip_gen: v5e
topology: v5e:2x2
jax: 0.10.0
libtpu: 0.0.40
codegen_flags: <defaults>
</compile_context>

<pallas_src>
import jax
import jax.numpy as jnp
from jax import lax
from jax.experimental import pallas as pl
from jax.experimental.pallas import tpu as pltpu

EPS = 1e-5
LANE = 128


def _round_up(n, m):
    return ((n + m - 1) // m) * m


# ---------------- Fused Pallas kernel ----------------

def _make_fused_mlp_kernel(num_hidden):
    """Kernel refs: x, (w_i, gb_i) * num_hidden, w_out, b_out, out."""

    def kernel(*refs):
        x_ref = refs[0]
        w_out_ref = refs[1 + 2 * num_hidden]
        b_out_ref = refs[2 + 2 * num_hidden]
        o_ref = refs[3 + 2 * num_hidden]

        h = x_ref[...]                                            # (N, Din_pad) f32
        for i in range(num_hidden):
            w_ref = refs[1 + 2 * i]                               # (Dprev_pad, H_pad)
            gb_ref = refs[2 + 2 * i]                              # (2, H_pad): [gamma; beta]

            # Linear (bias omitted: it cancels exactly under BatchNorm).
            z = jnp.dot(h, w_ref[...], preferred_element_type=jnp.float32)

            # BatchNorm1d, training-mode forward (biased batch statistics).
            mean = jnp.mean(z, axis=0, keepdims=True)             # (1, H_pad)
            centered = z - mean
            var = jnp.mean(centered * centered, axis=0, keepdims=True)
            scale = gb_ref[0:1, :] * lax.rsqrt(var + EPS)         # gamma folded into scale
            y = centered * scale + gb_ref[1:2, :]

            # ReLU; Dropout(p) is identity in eval mode.
            h = jnp.maximum(y, 0.0)

        # Final Linear (bias kept: no BN after it).
        o_ref[...] = (jnp.dot(h, w_out_ref[...], preferred_element_type=jnp.float32)
                      + b_out_ref[...]).astype(o_ref.dtype)

    return kernel


# ---------------- Wrapper: pad to lane-dense shapes, single pallas_call ----------------

def enhanced_neural_system_forward(x, params):
    n, input_dim = x.shape
    hidden = params["hidden"]
    w_out, b_out = params["out"]
    output_dim = w_out.shape[1]
    num_hidden = len(hidden)

    # Pad every feature axis up to a multiple of 128 with zeros. Zero-padded
    # columns stay exactly zero through Linear/BN/ReLU, so results are unchanged.
    din_p = _round_up(input_dim, LANE)
    x_p = jnp.zeros((n, din_p), jnp.float32).at[:, :input_dim].set(x)

    inputs = [x_p]
    prev, prev_p = input_dim, din_p
    for (w, _b, gamma, beta) in hidden:          # hidden-layer bias intentionally unused
        hd = w.shape[1]
        hd_p = _round_up(hd, LANE)
        w_p = jnp.zeros((prev_p, hd_p), jnp.float32).at[:prev, :hd].set(w)
        gamma_p = jnp.ones((hd_p,), jnp.float32).at[:hd].set(gamma)
        beta_p = jnp.zeros((hd_p,), jnp.float32).at[:hd].set(beta)
        gb_p = jnp.stack([gamma_p, beta_p], axis=0)               # (2, hd_p) packed
        inputs += [w_p, gb_p]
        prev, prev_p = hd, hd_p

    out_p = _round_up(output_dim, LANE)
    w_out_p = jnp.zeros((prev_p, out_p), jnp.float32).at[:prev, :output_dim].set(w_out)
    b_out_p = jnp.zeros((1, out_p), jnp.float32).at[0, :output_dim].set(b_out)
    inputs += [w_out_p, b_out_p]

    vmem_spec = pl.BlockSpec(memory_space=pltpu.MemorySpace.VMEM)
    out_padded = pl.pallas_call(
        _make_fused_mlp_kernel(num_hidden),
        out_shape=jax.ShapeDtypeStruct((n, out_p), jnp.float32),
        in_specs=[vmem_spec] * len(inputs),
        out_specs=vmem_spec,
        compiler_params=pltpu.CompilerParams(vmem_limit_bytes=64 * 1024 * 1024),
    )(*inputs)

    return out_padded[:, :output_dim]


# ---------------- Parameter construction (deterministic, mimics PyTorch Linear init) ----------------

def init_params(key, input_dim, hidden_dims, output_dim):
    params = {"hidden": [], "out": None}
    prev = input_dim
    for hd in hidden_dims:
        key, kw, kb = jax.random.split(key, 3)
        bound = 1.0 / jnp.sqrt(prev)
        w = jax.random.uniform(kw, (prev, hd), jnp.float32, -bound, bound)
        b = jax.random.uniform(kb, (hd,), jnp.float32, -bound, bound)
        gamma = jnp.ones((hd,), jnp.float32)    # BatchNorm1d weight init
        beta = jnp.zeros((hd,), jnp.float32)    # BatchNorm1d bias init
        params["hidden"].append((w, b, gamma, beta))
        prev = hd
    key, kw, kb = jax.random.split(key, 3)
    bound = 1.0 / jnp.sqrt(prev)
    w = jax.random.uniform(kw, (prev, output_dim), jnp.float32, -bound, bound)
    b = jax.random.uniform(kb, (output_dim,), jnp.float32, -bound, bound)
    params["out"] = (w, b)
    return params


# ---------------- Pure-JAX reference (exact torch forward semantics, incl. hidden bias) ----------------

def _reference_forward(x, params):
    h = x
    for (w, b, gamma, beta) in params["hidden"]:
        z = h @ w + b
        mean = jnp.mean(z, axis=0, keepdims=True)
        var = jnp.mean((z - mean) ** 2, axis=0, keepdims=True)
        z = gamma * (z - mean) / jnp.sqrt(var + EPS) + beta
        h = jnp.maximum(z, 0.0)
    w, b = params["out"]
    return h @ w + b


if __name__ == "__main__":
    input_dim, hidden_dims, output_dim = 16, [32, 32], 8
    batch = 16

    key = jax.random.PRNGKey(0)
    key, kx = jax.random.split(key)
    x = jax.random.normal(kx, (batch, input_dim), jnp.float32)

    params = init_params(key, input_dim, hidden_dims, output_dim)

    fwd = jax.jit(enhanced_neural_system_forward)
    out = fwd(x, params)
    out = jax.block_until_ready(out)

    ref = _reference_forward(x, params)
    assert out.shape == (batch, output_dim)
    assert jnp.allclose(out, ref, atol=1e-4, rtol=1e-4), "mismatch vs reference"

    print("KERNEL_OK")
</pallas_src>

<mosaic_0001>
module attributes {stable_mosaic.version = 11 : i64} {
  func.func @kernel(%arg0: memref<16x128xf32, #tpu.memory_space<vmem>>, %arg1: memref<128x128xf32, #tpu.memory_space<vmem>>, %arg2: memref<2x128xf32, #tpu.memory_space<vmem>>, %arg3: memref<128x128xf32, #tpu.memory_space<vmem>>, %arg4: memref<2x128xf32, #tpu.memory_space<vmem>>, %arg5: memref<128x128xf32, #tpu.memory_space<vmem>>, %arg6: memref<1x128xf32, #tpu.memory_space<vmem>>, %arg7: memref<16x128xf32, #tpu.memory_space<vmem>>) attributes {dimension_semantics = [], scalar_prefetch = 0 : i64, scratch_operands = 0 : i64, tpu.core_type = #tpu.core_type<tc>} {
    %c0 = arith.constant 0 : index
    %c0_0 = arith.constant 0 : index
    %0 = vector.load %arg0[%c0, %c0_0] : memref<16x128xf32, #tpu.memory_space<vmem>>, vector<16x128xf32>
    %c0_1 = arith.constant 0 : index
    %c0_2 = arith.constant 0 : index
    %1 = vector.load %arg1[%c0_1, %c0_2] : memref<128x128xf32, #tpu.memory_space<vmem>>, vector<128x128xf32>
    %cst = arith.constant dense<0.000000e+00> : vector<16x128xf32>
    %2 = tpu.matmul %0, %1, %cst {dimension_numbers = #tpu.dot_dimension_numbers<[1], [0], [0], [1], [0, 0, 1, 1], [], []>} : vector<16x128xf32>, vector<128x128xf32>, vector<16x128xf32> -> vector<16x128xf32>
    %cst_3 = arith.constant dense<0.000000e+00> : vector<128xf32>
    %3 = vector.multi_reduction <add>, %2, %cst_3 [0] : vector<16x128xf32> to vector<128xf32>
    %4 = vector.shape_cast %3 : vector<128xf32> to vector<1x128xf32>
    %cst_4 = arith.constant 1.600000e+01 : f32
    %5 = vector.broadcast %cst_4 : f32 to vector<1x128xf32>
    %6 = arith.divf %4, %5 : vector<1x128xf32>
    %7 = vector.broadcast %6 : vector<1x128xf32> to vector<16x128xf32>
    %8 = arith.subf %2, %7 : vector<16x128xf32>
    %9 = arith.mulf %8, %8 : vector<16x128xf32>
    %cst_5 = arith.constant dense<0.000000e+00> : vector<128xf32>
    %10 = vector.multi_reduction <add>, %9, %cst_5 [0] : vector<16x128xf32> to vector<128xf32>
    %11 = vector.shape_cast %10 : vector<128xf32> to vector<1x128xf32>
    %cst_6 = arith.constant 1.600000e+01 : f32
    %12 = vector.broadcast %cst_6 : f32 to vector<1x128xf32>
    %13 = arith.divf %11, %12 : vector<1x128xf32>
    %c0_7 = arith.constant 0 : index
    %c0_8 = arith.constant 0 : index
    %14 = vector.load %arg2[%c0_7, %c0_8] : memref<2x128xf32, #tpu.memory_space<vmem>>, vector<1x128xf32>
    %cst_9 = arith.constant 9.99999974E-6 : f32
    %15 = vector.broadcast %cst_9 : f32 to vector<1x128xf32>
    %16 = arith.addf %13, %15 : vector<1x128xf32>
    %17 = math.rsqrt %16 : vector<1x128xf32>
    %18 = arith.mulf %14, %17 : vector<1x128xf32>
    %19 = vector.broadcast %18 : vector<1x128xf32> to vector<16x128xf32>
    %20 = arith.mulf %8, %19 : vector<16x128xf32>
    %c1 = arith.constant 1 : index
    %c0_10 = arith.constant 0 : index
    %21 = vector.load %arg2[%c1, %c0_10] : memref<2x128xf32, #tpu.memory_space<vmem>>, vector<1x128xf32>
    %22 = vector.broadcast %21 : vector<1x128xf32> to vector<16x128xf32>
    %23 = arith.addf %20, %22 : vector<16x128xf32>
    %cst_11 = arith.constant 0.000000e+00 : f32
    %24 = vector.broadcast %cst_11 : f32 to vector<16x128xf32>
    %25 = arith.maximumf %23, %24 : vector<16x128xf32>
    %c0_12 = arith.constant 0 : index
    %c0_13 = arith.constant 0 : index
    %26 = vector.load %arg3[%c0_12, %c0_13] : memref<128x128xf32, #tpu.memory_space<vmem>>, vector<128x128xf32>
    %cst_14 = arith.constant dense<0.000000e+00> : vector<16x128xf32>
    %27 = tpu.matmul %25, %26, %cst_14 {dimension_numbers = #tpu.dot_dimension_numbers<[1], [0], [0], [1], [0, 0, 1, 1], [], []>} : vector<16x128xf32>, vector<128x128xf32>, vector<16x128xf32> -> vector<16x128xf32>
    %cst_15 = arith.constant dense<0.000000e+00> : vector<128xf32>
    %28 = vector.multi_reduction <add>, %27, %cst_15 [0] : vector<16x128xf32> to vector<128xf32>
    %29 = vector.shape_cast %28 : vector<128xf32> to vector<1x128xf32>
    %cst_16 = arith.constant 1.600000e+01 : f32
    %30 = vector.broadcast %cst_16 : f32 to vector<1x128xf32>
    %31 = arith.divf %29, %30 : vector<1x128xf32>
    %32 = vector.broadcast %31 : vector<1x128xf32> to vector<16x128xf32>
    %33 = arith.subf %27, %32 : vector<16x128xf32>
    %34 = arith.mulf %33, %33 : vector<16x128xf32>
    %cst_17 = arith.constant dense<0.000000e+00> : vector<128xf32>
    %35 = vector.multi_reduction <add>, %34, %cst_17 [0] : vector<16x128xf32> to vector<128xf32>
    %36 = vector.shape_cast %35 : vector<128xf32> to vector<1x128xf32>
    %cst_18 = arith.constant 1.600000e+01 : f32
    %37 = vector.broadcast %cst_18 : f32 to vector<1x128xf32>
    %38 = arith.divf %36, %37 : vector<1x128xf32>
    %c0_19 = arith.constant 0 : index
    %c0_20 = arith.constant 0 : index
    %39 = vector.load %arg4[%c0_19, %c0_20] : memref<2x128xf32, #tpu.memory_space<vmem>>, vector<1x128xf32>
    %cst_21 = arith.constant 9.99999974E-6 : f32
    %40 = vector.broadcast %cst_21 : f32 to vector<1x128xf32>
    %41 = arith.addf %38, %40 : vector<1x128xf32>
    %42 = math.rsqrt %41 : vector<1x128xf32>
    %43 = arith.mulf %39, %42 : vector<1x128xf32>
    %44 = vector.broadcast %43 : vector<1x128xf32> to vector<16x128xf32>
    %45 = arith.mulf %33, %44 : vector<16x128xf32>
    %c1_22 = arith.constant 1 : index
    %c0_23 = arith.constant 0 : index
    %46 = vector.load %arg4[%c1_22, %c0_23] : memref<2x128xf32, #tpu.memory_space<vmem>>, vector<1x128xf32>
    %47 = vector.broadcast %46 : vector<1x128xf32> to vector<16x128xf32>
    %48 = arith.addf %45, %47 : vector<16x128xf32>
    %cst_24 = arith.constant 0.000000e+00 : f32
    %49 = vector.broadcast %cst_24 : f32 to vector<16x128xf32>
    %50 = arith.maximumf %48, %49 : vector<16x128xf32>
    %c0_25 = arith.constant 0 : index
    %c0_26 = arith.constant 0 : index
    %51 = vector.load %arg5[%c0_25, %c0_26] : memref<128x128xf32, #tpu.memory_space<vmem>>, vector<128x128xf32>
    %cst_27 = arith.constant dense<0.000000e+00> : vector<16x128xf32>
    %52 = tpu.matmul %50, %51, %cst_27 {dimension_numbers = #tpu.dot_dimension_numbers<[1], [0], [0], [1], [0, 0, 1, 1], [], []>} : vector<16x128xf32>, vector<128x128xf32>, vector<16x128xf32> -> vector<16x128xf32>
    %c0_28 = arith.constant 0 : index
    %c0_29 = arith.constant 0 : index
    %53 = vector.load %arg6[%c0_28, %c0_29] : memref<1x128xf32, #tpu.memory_space<vmem>>, vector<1x128xf32>
    %54 = vector.broadcast %53 : vector<1x128xf32> to vector<16x128xf32>
    %55 = arith.addf %52, %54 : vector<16x128xf32>
    %c0_30 = arith.constant 0 : index
    %c0_31 = arith.constant 0 : index
    %56 = vector.load %arg7[%c0_30, %c0_31] : memref<16x128xf32, #tpu.memory_space<vmem>>, vector<16x128xf32>
    tpu.vector_store %arg7[%c0_30, %c0_31], %55 {strides = array<i32>} : memref<16x128xf32, #tpu.memory_space<vmem>>, vector<16x128xf32>,
    return
  }
}

</mosaic_0001>

<llo_original>
// kernel: enhanced_neural_system_forward.1
$region0: #{enhanced_neural_system_forward.1}
  #allocation0 [shape = 'u32[]', space=smem, size = 0x4, offset = 0x4, fixed_abs, tag = 'smem constant byte address 0x4 - core index']
  #allocation1 [shape = 'u32[72,128]{1,0:T(1,128)}', space=vmem, size = 0x9000, scoped, tag = 'internal scratch']
  %s0 = inlined_call_operand.vmem [shape: f32[16,128], index: 0, kind: input, shape index: {}]
  %s1 = inlined_call_operand.vmem [shape: f32[128,128], index: 1, kind: input, shape index: {}]
  %s2 = inlined_call_operand.vmem [shape: f32[2,128], index: 2, kind: input, shape index: {}]
  %s3 = inlined_call_operand.vmem [shape: f32[128,128], index: 3, kind: input, shape index: {}]
  %s4 = inlined_call_operand.vmem [shape: f32[2,128], index: 4, kind: input, shape index: {}]
  %s5 = inlined_call_operand.vmem [shape: f32[128,128], index: 5, kind: input, shape index: {}]
  %s6 = inlined_call_operand.vmem [shape: f32[1,128], index: 6, kind: input, shape index: {}]
  %s7 = inlined_call_operand.vmem [shape: f32[16,128], index: 7, kind: output, shape index: {}]
  %s8 = sld [smem:[#allocation0]]
  $region38: #{enhanced_neural_system_forward.1} parent=0
    _
  %s10 = ssub.s32 1, %s8
  %s11 = scalar_select 0, %s10, %s8
  // Predicated region
  $region2: #{enhanced_neural_system_forward.1} parent=0 // pred_check
    _
  $region3: #{enhanced_neural_system_forward.1} parent=0 // pred_check_branch
    %13 = sbr.rel (0) target = $region5
  $region4: #{enhanced_neural_system_forward.1} parent=0 // pred_region
    _
  $region5: #{enhanced_neural_system_forward.1} parent=0 // pred_fallthru
    _
  // Predicated region
  $region6: #{enhanced_neural_system_forward.1} parent=0 // pred_check
    _
  $region7: #{enhanced_neural_system_forward.1} parent=0 // pred_check_branch
    %15 = sbr.rel (0) target = $region9
  $region8: #{enhanced_neural_system_forward.1} parent=0 // pred_region
    _
  $region9: #{enhanced_neural_system_forward.1} parent=0 // pred_fallthru
    _
  // Predicated region
  $region10: #{enhanced_neural_system_forward.1} parent=0 // pred_check
    _
  $region11: #{enhanced_neural_system_forward.1} parent=0 // pred_check_branch
    %17 = sbr.rel (0) target = $region13
  $region12: #{enhanced_neural_system_forward.1} parent=0 // pred_region
    _
  $region13: #{enhanced_neural_system_forward.1} parent=0 // pred_fallthru
    _
  // Predicated region
  $region14: #{enhanced_neural_system_forward.1} parent=0 // pred_check
    _
  $region15: #{enhanced_neural_system_forward.1} parent=0 // pred_check_branch
    %19 = sbr.rel (0) target = $region17
  $region16: #{enhanced_neural_system_forward.1} parent=0 // pred_region
    _
  $region17: #{enhanced_neural_system_forward.1} parent=0 // pred_fallthru
    _
  // Predicated region
  $region18: #{enhanced_neural_system_forward.1} parent=0 // pred_check
    _
  $region19: #{enhanced_neural_system_forward.1} parent=0 // pred_check_branch
    %21 = sbr.rel (0) target = $region21
  $region20: #{enhanced_neural_system_forward.1} parent=0 // pred_region
    _
  $region21: #{enhanced_neural_system_forward.1} parent=0 // pred_fallthru
    _
  // Predicated region
  $region22: #{enhanced_neural_system_forward.1} parent=0 // pred_check
    _
  $region23: #{enhanced_neural_system_forward.1} parent=0 // pred_check_branch
    %23 = sbr.rel (0) target = $region25
  $region24: #{enhanced_neural_system_forward.1} parent=0 // pred_region
    _
  $region25: #{enhanced_neural_system_forward.1} parent=0 // pred_fallthru
    _
  // Predicated region
  $region26: #{enhanced_neural_system_forward.1} parent=0 // pred_check
    _
  $region27: #{enhanced_neural_system_forward.1} parent=0 // pred_check_branch
    %25 = sbr.rel (0) target = $region29
  $region28: #{enhanced_neural_system_forward.1} parent=0 // pred_region
    _
  $region29: #{enhanced_neural_system_forward.1} parent=0 // pred_fallthru
    _
  %v26 = vld [vmem:[%s0] sm:$0xff]
  %v27 = vld [vmem:[%s0 + $0x8] sm:$0xff]
  %v28 = vld [vmem:[%s1] sm:$0xff]
  %v29 = vld [vmem:[%s1 + $0x8] sm:$0xff]
  %v30 = vld [vmem:[%s1 + $0x10] sm:$0xff]
  %v31 = vld [vmem:[%s1 + $0x18] sm:$0xff]
  %v32 = vld [vmem:[%s1 + $0x20] sm:$0xff]
  %v33 = vld [vmem:[%s1 + $0x28] sm:$0xff]
  %v34 = vld [vmem:[%s1 + $0x30] sm:$0xff]
  %v35 = vld [vmem:[%s1 + $0x38] sm:$0xff]
  %v36 = vld [vmem:[%s1 + $0x40] sm:$0xff]
  %v37 = vld [vmem:[%s1 + $0x48] sm:$0xff]
  %v38 = vld [vmem:[%s1 + $0x50] sm:$0xff]
  %v39 = vld [vmem:[%s1 + $0x58] sm:$0xff]
  %v40 = vld [vmem:[%s1 + $0x60] sm:$0xff]
  %v41 = vld [vmem:[%s1 + $0x68] sm:$0xff]
  %v42 = vld [vmem:[%s1 + $0x70] sm:$0xff]
  %v43 = vld [vmem:[%s1 + $0x78] sm:$0xff]
  %44 = vmatpush.msra.mxu0 %v43
  %45 = vmatpush.msra.mxu0 %v42
  %46 = vmatpush.msra.mxu0 %v41
  %47 = vmatpush.msra.mxu0 %v40
  %48 = vmatpush.msra.mxu0 %v39
  %49 = vmatpush.msra.mxu0 %v38
  %50 = vmatpush.msra.mxu0 %v37
  %51 = vmatpush.msra.mxu0 %v36
  %52 = vmatpush.msra.mxu0 %v35
  %53 = vmatpush.msra.mxu0 %v34
  %54 = vmatpush.msra.mxu0 %v33
  %55 = vmatpush.msra.mxu0 %v32
  %56 = vmatpush.msra.mxu0 %v31
  %57 = vmatpush.msra.mxu0 %v30
  %58 = vmatpush.msra.mxu0 %v29
  %59 = vmatpush.msra.mxu0 %v28
  %60 = vmatmul.f32.gmra.mxu0 %v26
  %v61 = vpop.f32.mrf.mxu0
  %v62 = vadd.f32 0.0, %v61
  %63 = vmatmul.f32.gmra.mxu0 %v27
  %v64 = vpop.f32.mrf.mxu0
  %v65 = vadd.f32 0.0, %v64
  %66 = vdwg.mxu0
  %v67 = vadd.f32 %v62, %v65
  %v68 = vrot.slane %v67, 4
  %v69 = vadd.f32 %v67, %v68
  %v70 = vrot.slane %v69, 2
  %v71 = vadd.f32 %v69, %v70
  %v72 = vrot.slane %v71, 1
  %v73 = vadd.f32 %v71, %v72
  %v74 = vrcp.pop 16.0
  %v75 = vmul.f32 16.0, %v74
  %v76 = vsub.f32 1.0, %v75
  %v77 = vmul.f32 %v74, %v76
  %v78 = vadd.f32 %v74, %v77
  %vm79 = vweird.f32 %v74
  %v80 = vsel %vm79, %v74, %v78
  %v81 = vmul.f32 %v73, %v80
  %v82 = vsub.f32 %v62, %v81
  %v83 = vsub.f32 %v65, %v81
  %v84 = vmul.f32 %v82, %v82
  %v85 = vmul.f32 %v83, %v83
  %v86 = vadd.f32 %v84, %v85
  %v87 = vrot.slane %v86, 4
  %v88 = vadd.f32 %v86, %v87
  %v89 = vrot.slane %v88, 2
  %v90 = vadd.f32 %v88, %v89
  %v91 = vrot.slane %v90, 1
  %v92 = vadd.f32 %v90, %v91
  %v93 = vmul.f32 %v92, %v80
  %v94 = vld [vmem:[%s2] sm:$0x1]
  %v95 = vadd.f32 %v93, 1e-05
  %v96 = vrsqrt.pop %v95
  %v97 = vmul.f32 %v96, %v95
  %v98 = vmul.f32 %v97, %v96
  %v99 = vmul.f32 0.5, %v98
  %v100 = vsub.f32 1.5, %v99
  %v101 = vmul.f32 %v96, %v100
  %vm102 = vweird.f32 %v95
  %vm103 = vweird.f32 %v96
  %vm104 = vmor %vm102, %vm103
  %v105 = vsel %vm104, %v96, %v101
  %v106 = vmul.f32 %v94, %v105
  %v107 = vperm.slane %v106, 0
  %v108 = vmul.f32 %v82, %v107
  %v109 = vmul.f32 %v83, %v107
  %v110 = vld [vmem:[%s2 + $0x1] sm:$0x1]
  %v111 = vperm.slane %v110, 0
  %v112 = vadd.f32 %v108, %v111
  %v113 = vadd.f32 %v109, %v111
  %v114 = vmax.f32 %v112, 0.0
  %v115 = vmax.f32 %v113, 0.0
  %v116 = vld [vmem:[%s3] sm:$0xff]
  %v117 = vld [vmem:[%s3 + $0x8] sm:$0xff]
  %v118 = vld [vmem:[%s3 + $0x10] sm:$0xff]
  %v119 = vld [vmem:[%s3 + $0x18] sm:$0xff]
  %v120 = vld [vmem:[%s3 + $0x20] sm:$0xff]
  %v121 = vld [vmem:[%s3 + $0x28] sm:$0xff]
  %v122 = vld [vmem:[%s3 + $0x30] sm:$0xff]
  %v123 = vld [vmem:[%s3 + $0x38] sm:$0xff]
  %v124 = vld [vmem:[%s3 + $0x40] sm:$0xff]
  %v125 = vld [vmem:[%s3 + $0x48] sm:$0xff]
  %v126 = vld [vmem:[%s3 + $0x50] sm:$0xff]
  %v127 = vld [vmem:[%s3 + $0x58] sm:$0xff]
  %v128 = vld [vmem:[%s3 + $0x60] sm:$0xff]
  %v129 = vld [vmem:[%s3 + $0x68] sm:$0xff]
  %v130 = vld [vmem:[%s3 + $0x70] sm:$0xff]
  %v131 = vld [vmem:[%s3 + $0x78] sm:$0xff]
  %132 = vmatpush.msra.mxu0 %v131
  %133 = vmatpush.msra.mxu0 %v130
  %134 = vmatpush.msra.mxu0 %v129
  %135 = vmatpush.msra.mxu0 %v128
  %136 = vmatpush.msra.mxu0 %v127
  %137 = vmatpush.msra.mxu0 %v126
  %138 = vmatpush.msra.mxu0 %v125
  %139 = vmatpush.msra.mxu0 %v124
  %140 = vmatpush.msra.mxu0 %v123
  %141 = vmatpush.msra.mxu0 %v122
  %142 = vmatpush.msra.mxu0 %v121
  %143 = vmatpush.msra.mxu0 %v120
  %144 = vmatpush.msra.mxu0 %v119
  %145 = vmatpush.msra.mxu0 %v118
  %146 = vmatpush.msra.mxu0 %v117
  %147 = vmatpush.msra.mxu0 %v116
  %148 = vmatmul.f32.gmra.mxu0 %v114
  %v149 = vpop.f32.mrf.mxu0
  %v150 = vadd.f32 0.0, %v149
  %151 = vmatmul.f32.gmra.mxu0 %v115
  %v152 = vpop.f32.mrf.mxu0
  %v153 = vadd.f32 0.0, %v152
  %154 = vdwg.mxu0
  %v155 = vadd.f32 %v150, %v153
  %v156 = vrot.slane %v155, 4
  %v157 = vadd.f32 %v155, %v156
  %v158 = vrot.slane %v157, 2
  %v159 = vadd.f32 %v157, %v158
  %v160 = vrot.slane %v159, 1
  %v161 = vadd.f32 %v159, %v160
  %v162 = vmul.f32 %v161, %v80
  %v163 = vsub.f32 %v150, %v162
  %v164 = vsub.f32 %v153, %v162
  %v165 = vmul.f32 %v163, %v163
  %v166 = vmul.f32 %v164, %v164
  %v167 = vadd.f32 %v165, %v166
  %v168 = vrot.slane %v167, 4
  %v169 = vadd.f32 %v167, %v168
  %v170 = vrot.slane %v169, 2
  %v171 = vadd.f32 %v169, %v170
  %v172 = vrot.slane %v171, 1
  %v173 = vadd.f32 %v171, %v172
  %v174 = vmul.f32 %v173, %v80
  %v175 = vld [vmem:[%s4] sm:$0x1]
  %v176 = vadd.f32 %v174, 1e-05
  %v177 = vrsqrt.pop %v176
  %v178 = vmul.f32 %v177, %v176
  %v179 = vmul.f32 %v178, %v177
  %v180 = vmul.f32 0.5, %v179
  %v181 = vsub.f32 1.5, %v180
  %v182 = vmul.f32 %v177, %v181
  %vm183 = vweird.f32 %v176
  %vm184 = vweird.f32 %v177
  %vm185 = vmor %vm183, %vm184
  %v186 = vsel %vm185, %v177, %v182
  %v187 = vmul.f32 %v175, %v186
  %v188 = vperm.slane %v187, 0
  %v189 = vmul.f32 %v163, %v188
  %v190 = vmul.f32 %v164, %v188
  %v191 = vld [vmem:[%s4 + $0x1] sm:$0x1]
  %v192 = vperm.slane %v191, 0
  %v193 = vadd.f32 %v189, %v192
  %v194 = vadd.f32 %v190, %v192
  %v195 = vmax.f32 %v193, 0.0
  %v196 = vmax.f32 %v194, 0.0
  %v197 = vld [vmem:[%s5] sm:$0xff]
  %v198 = vld [vmem:[%s5 + $0x8] sm:$0xff]
  %v199 = vld [vmem:[%s5 + $0x10] sm:$0xff]
  %v200 = vld [vmem:[%s5 + $0x18] sm:$0xff]
  %v201 = vld [vmem:[%s5 + $0x20] sm:$0xff]
  %v202 = vld [vmem:[%s5 + $0x28] sm:$0xff]
  %v203 = vld [vmem:[%s5 + $0x30] sm:$0xff]
  %v204 = vld [vmem:[%s5 + $0x38] sm:$0xff]
  %v205 = vld [vmem:[%s5 + $0x40] sm:$0xff]
  %v206 = vld [vmem:[%s5 + $0x48] sm:$0xff]
  %v207 = vld [vmem:[%s5 + $0x50] sm:$0xff]
  %v208 = vld [vmem:[%s5 + $0x58] sm:$0xff]
  %v209 = vld [vmem:[%s5 + $0x60] sm:$0xff]
  %v210 = vld [vmem:[%s5 + $0x68] sm:$0xff]
  %v211 = vld [vmem:[%s5 + $0x70] sm:$0xff]
  %v212 = vld [vmem:[%s5 + $0x78] sm:$0xff]
  %v213 = vld [vmem:[%s6] sm:$0x1]
  %v215 = vperm.slane %v213, 0
  %217 = vmatpush.msra.mxu0 %v212
  %218 = vmatpush.msra.mxu0 %v211
  %219 = vmatpush.msra.mxu0 %v210
  %220 = vmatpush.msra.mxu0 %v209
  %221 = vmatpush.msra.mxu0 %v208
  %222 = vmatpush.msra.mxu0 %v207
  %223 = vmatpush.msra.mxu0 %v206
  %224 = vmatpush.msra.mxu0 %v205
  %225 = vmatpush.msra.mxu0 %v204
  %226 = vmatpush.msra.mxu0 %v203
  %227 = vmatpush.msra.mxu0 %v202
  %228 = vmatpush.msra.mxu0 %v201
  %229 = vmatpush.msra.mxu0 %v200
  %230 = vmatpush.msra.mxu0 %v199
  %231 = vmatpush.msra.mxu0 %v198
  %232 = vmatpush.msra.mxu0 %v197
  %233 = vmatmul.f32.gmra.mxu0 %v195
  %v234 = vpop.f32.mrf.mxu0
  %v235 = vadd.f32 %v215, %v234
  %236 = vmatmul.f32.gmra.mxu0 %v196
  %v237 = vpop.f32.mrf.mxu0
  %v238 = vadd.f32 %v215, %v237
  %239 = vdwg.mxu0
  %240 = vst [vmem:[%s7] sm:$0xff] %v235
  %241 = vst [vmem:[%s7 + $0x8] sm:$0xff] %v238
  // Predicated region
  $region30: #{enhanced_neural_system_forward.1} parent=0 // pred_check
    _
  $region31: #{enhanced_neural_system_forward.1} parent=0 // pred_check_branch
    %243 = sbr.rel (0) target = $region33
  $region32: #{enhanced_neural_system_forward.1} parent=0 // pred_region
    _
  $region33: #{enhanced_neural_system_forward.1} parent=0 // pred_fallthru
    _
  // Predicated region
  $region34: #{enhanced_neural_system_forward.1} parent=0 // pred_check
    _
  $region35: #{enhanced_neural_system_forward.1} parent=0 // pred_check_branch
    %245 = sbr.rel (0) target = $region37
  $region36: #{enhanced_neural_system_forward.1} parent=0 // pred_region
    _
  $region37: #{enhanced_neural_system_forward.1} parent=0 // pred_fallthru
    _

</llo_original>
